<compile_context>
chip_gen: v7x
topology: tpu7x:2x2x1
jax: 0.10.0
libtpu: 0.0.40
codegen_flags: <defaults>
</compile_context>

<pallas_src>
import math

import jax
import jax.numpy as jnp
from jax.experimental import pallas as pl
from jax.experimental.pallas import tpu as pltpu


# ----------------------------- Pallas kernel -----------------------------
def _make_conv_kernel(K, Wp, Lout, Nb):
    # Tap k = (kh, kw) reads flat offset kh*Wp + kw (tap-major, kw-minor).
    offs = [kh * Wp + kw for kh in range(K) for kw in range(K)]

    def kernel(x_ref, w_ref, b_ref, out_ref):
        # x_ref:   [Nb, Cp, Lx]        zero-padded, row-flattened images
        # w_ref:   [C_out, K*K*Cp]     scale-folded, tap-stacked weights
        # b_ref:   [C_out, 1]          scale-folded bias
        # out_ref: [Nb, C_out, Lout]   lane-dense output (cropped on host)
        w = w_ref[...]
        b = b_ref[...]
        for n in range(Nb):                       # static unroll (Nb is tiny)
            # Nine shifted windows, each [Cp, Lout] with Cp % 8 == 0 and
            # Lout % 128 == 0 -> aligned sublane concatenation.
            taps = [x_ref[n, :, off:off + Lout] for off in offs]
            rhs = jnp.concatenate(taps, axis=0)   # [K*K*Cp, Lout]
            out_ref[n] = jnp.dot(w, rhs, preferred_element_type=jnp.float32) + b

    return kernel


# ------------------------------- wrapper ----------------------------------
def equalized_conv2d(x, weight, bias, scale):
    """x: [N, C, H, W] (NCHW). weight: [C_out, C, K, K]. Returns NCHW f32."""
    N, C, H, W = x.shape
    C_out, C_in, K, K2 = weight.shape
    assert C_in == C and K == K2 and K % 2 == 1
    pad = K // 2
    Hp, Wp = H + 2 * pad, W + 2 * pad
    Cp = ((C + 7) // 8) * 8                         # sublane-pad channels
    max_off = (K - 1) * Wp + (K - 1)                # largest tap offset
    Lout = ((H * Wp + 127) // 128) * 128            # output lanes (covers all kept l)
    Lx = ((Lout + max_off + 127) // 128) * 128      # input lanes (covers all taps)

    # Grid: at most two "parallel" steps over the batch (feeds both v7x
    # TensorCores); each step processes Nb images.
    G = 2 if (N % 2 == 0 and N >= 2) else 1
    Nb = N // G

    # ---- light host glue (no im2col, no transposes) ----
    # Correctness of the shifted-window formulation: output flat position
    # l = h*Wp + w (h < H, w < W) for tap (kh, kw) reads flat position
    # l + kh*Wp + kw = (h+kh)*Wp + (w+kw) <= Hp*Wp - 1 < Lx, i.e. exactly
    # xp[c, h+kh, w+kw]; no row spill and no wrap (windows never wrap because
    # they are slices of a physically wider, zero-padded buffer).
    xpad = jnp.pad(x.astype(jnp.float32),
                   ((0, 0), (0, Cp - C), (pad, pad), (pad, pad)))    # [N,Cp,Hp,Wp]
    xflat = jnp.pad(xpad.reshape(N, Cp, Hp * Wp),
                    ((0, 0), (0, 0), (0, Lx - Hp * Wp)))             # [N,Cp,Lx]

    # Fold the equalized-lr scale into weight and bias:
    #   conv(x; W, b) * s == conv(x; W*s, b*s)
    w_scaled = weight.astype(jnp.float32) * scale                    # [C_out,C,K,K]
    w_padded = jnp.pad(w_scaled, ((0, 0), (0, Cp - C), (0, 0), (0, 0)))
    # Column order must match the kernel's tap-major / channel-minor stacking:
    # col = (kh*K + kw) * Cp + c
    w_flat = jnp.transpose(w_padded, (0, 2, 3, 1)).reshape(C_out, K * K * Cp)
    b2d = (bias.astype(jnp.float32) * scale).reshape(C_out, 1)

    kernel = _make_conv_kernel(K, Wp, Lout, Nb)
    outflat = pl.pallas_call(
        kernel,
        out_shape=jax.ShapeDtypeStruct((N, C_out, Lout), jnp.float32),
        grid=(G,),
        in_specs=[
            pl.BlockSpec((Nb, Cp, Lx), lambda g: (g, 0, 0)),
            pl.BlockSpec((C_out, K * K * Cp), lambda g: (0, 0)),
            pl.BlockSpec((C_out, 1), lambda g: (0, 0)),
        ],
        out_specs=pl.BlockSpec((Nb, C_out, Lout), lambda g: (g, 0, 0)),
        compiler_params=pltpu.CompilerParams(
            dimension_semantics=("parallel",)),
    )(xflat, w_flat, b2d)

    # Crop the Wp-strided, lane-padded output back to [N, C_out, H, W] (NCHW).
    # (Downstream consumers could accept the Wp-strided layout and skip this.)
    return outflat[:, :, :H * Wp].reshape(N, C_out, H, Wp)[:, :, :, :W]


# --------------------------- reference (JAX) ------------------------------
def _reference(x, weight, bias, scale):
    y = jax.lax.conv_general_dilated(
        x, weight, window_strides=(1, 1), padding="SAME",
        dimension_numbers=("NCHW", "OIHW", "NCHW"))
    y = y + bias.reshape(1, -1, 1, 1)
    return y * scale


if __name__ == "__main__":
    # ConstrainedLayer(nn.Conv2d(4, 8, 3, padding=1), equalized=True, lrMul=1.0,
    #                  init_bias_to_zero=True)
    N, C_in, H, W = 2, 4, 16, 16
    C_out, K = 8, 3
    lr_mul = 1.0

    key = jax.random.PRNGKey(0)
    kx, kw = jax.random.split(key)

    x = jax.random.normal(kx, (N, C_in, H, W), dtype=jnp.float32)

    # equalized init: weight ~ N(0,1) / lrMul ; bias = 0
    weight = jax.random.normal(kw, (C_out, C_in, K, K), dtype=jnp.float32) / lr_mul
    bias = jnp.zeros((C_out,), dtype=jnp.float32)

    # getLayerNormalizationFactor: sqrt(2 / fan_in), fan_in = C_in * K * K
    fan_in = C_in * K * K
    scale = math.sqrt(2.0 / fan_in) * lr_mul

    y = equalized_conv2d(x, weight, bias, scale)
    y = jax.block_until_ready(y)

    y_ref = _reference(x, weight, bias, scale)
    assert y.shape == (N, C_out, H, W)
    max_err = float(jnp.max(jnp.abs(y - y_ref)))
    assert jnp.allclose(y, y_ref, atol=1e-4, rtol=1e-4), max_err

    print("KERNEL_OK")
</pallas_src>

<mosaic_0001>
module attributes {stable_mosaic.version = 11 : i64} {
  func.func @kernel(%arg0: i32, %arg1: memref<1x8x512xf32, #tpu.memory_space<vmem>>, %arg2: memref<8x72xf32, #tpu.memory_space<vmem>>, %arg3: memref<8x1xf32, #tpu.memory_space<vmem>>, %arg4: memref<1x8x384xf32, #tpu.memory_space<vmem>>) attributes {dimension_semantics = [#tpu.dimension_semantics<parallel>], iteration_bounds = array<i64: 2>, scalar_prefetch = 0 : i64, scratch_operands = 0 : i64, tpu.core_type = #tpu.core_type<tc>, window_params = [{transform_indices = @transform_0, window_bounds = array<i64: 1, 8, 512>}, {pipeline_mode = #tpu.pipeline_mode<synchronous>, transform_indices = @transform_1, window_bounds = array<i64: 8, 72>}, {pipeline_mode = #tpu.pipeline_mode<synchronous>, transform_indices = @transform_2, window_bounds = array<i64: 8, 1>}, {transform_indices = @transform_3, window_bounds = array<i64: 1, 8, 384>}]} {
    %c0 = arith.constant 0 : index
    %c0_0 = arith.constant 0 : index
    %0 = vector.load %arg2[%c0, %c0_0] : memref<8x72xf32, #tpu.memory_space<vmem>>, vector<8x72xf32>
    %c0_1 = arith.constant 0 : index
    %c0_2 = arith.constant 0 : index
    %1 = vector.load %arg3[%c0_1, %c0_2] : memref<8x1xf32, #tpu.memory_space<vmem>>, vector<8x1xf32>
    %c0_3 = arith.constant 0 : index
    %c0_4 = arith.constant 0 : index
    %c0_5 = arith.constant 0 : index
    %2 = vector.load %arg1[%c0_3, %c0_4, %c0_5] : memref<1x8x512xf32, #tpu.memory_space<vmem>>, vector<1x8x384xf32>
    %3 = vector.shape_cast %2 : vector<1x8x384xf32> to vector<8x384xf32>
    %c0_6 = arith.constant 0 : index
    %c0_7 = arith.constant 0 : index
    %c1 = arith.constant 1 : index
    %4 = vector.load %arg1[%c0_6, %c0_7, %c1] : memref<1x8x512xf32, #tpu.memory_space<vmem>>, vector<1x8x384xf32>
    %5 = vector.shape_cast %4 : vector<1x8x384xf32> to vector<8x384xf32>
    %c0_8 = arith.constant 0 : index
    %c0_9 = arith.constant 0 : index
    %c2 = arith.constant 2 : index
    %6 = vector.load %arg1[%c0_8, %c0_9, %c2] : memref<1x8x512xf32, #tpu.memory_space<vmem>>, vector<1x8x384xf32>
    %7 = vector.shape_cast %6 : vector<1x8x384xf32> to vector<8x384xf32>
    %c0_10 = arith.constant 0 : index
    %c0_11 = arith.constant 0 : index
    %c18 = arith.constant 18 : index
    %8 = vector.load %arg1[%c0_10, %c0_11, %c18] : memref<1x8x512xf32, #tpu.memory_space<vmem>>, vector<1x8x384xf32>
    %9 = vector.shape_cast %8 : vector<1x8x384xf32> to vector<8x384xf32>
    %c0_12 = arith.constant 0 : index
    %c0_13 = arith.constant 0 : index
    %c19 = arith.constant 19 : index
    %10 = vector.load %arg1[%c0_12, %c0_13, %c19] : memref<1x8x512xf32, #tpu.memory_space<vmem>>, vector<1x8x384xf32>
    %11 = vector.shape_cast %10 : vector<1x8x384xf32> to vector<8x384xf32>
    %c0_14 = arith.constant 0 : index
    %c0_15 = arith.constant 0 : index
    %c20 = arith.constant 20 : index
    %12 = vector.load %arg1[%c0_14, %c0_15, %c20] : memref<1x8x512xf32, #tpu.memory_space<vmem>>, vector<1x8x384xf32>
    %13 = vector.shape_cast %12 : vector<1x8x384xf32> to vector<8x384xf32>
    %c0_16 = arith.constant 0 : index
    %c0_17 = arith.constant 0 : index
    %c36 = arith.constant 36 : index
    %14 = vector.load %arg1[%c0_16, %c0_17, %c36] : memref<1x8x512xf32, #tpu.memory_space<vmem>>, vector<1x8x384xf32>
    %15 = vector.shape_cast %14 : vector<1x8x384xf32> to vector<8x384xf32>
    %c0_18 = arith.constant 0 : index
    %c0_19 = arith.constant 0 : index
    %c37 = arith.constant 37 : index
    %16 = vector.load %arg1[%c0_18, %c0_19, %c37] : memref<1x8x512xf32, #tpu.memory_space<vmem>>, vector<1x8x384xf32>
    %17 = vector.shape_cast %16 : vector<1x8x384xf32> to vector<8x384xf32>
    %c0_20 = arith.constant 0 : index
    %c0_21 = arith.constant 0 : index
    %c38 = arith.constant 38 : index
    %18 = vector.load %arg1[%c0_20, %c0_21, %c38] : memref<1x8x512xf32, #tpu.memory_space<vmem>>, vector<1x8x384xf32>
    %19 = vector.shape_cast %18 : vector<1x8x384xf32> to vector<8x384xf32>
    %20 = tpu.concatenate %3, %5, %7, %9, %11, %13, %15, %17, %19 in 0 : vector<8x384xf32>, vector<8x384xf32>, vector<8x384xf32>, vector<8x384xf32>, vector<8x384xf32>, vector<8x384xf32>, vector<8x384xf32>, vector<8x384xf32>, vector<8x384xf32> -> vector<72x384xf32>
    %cst = arith.constant dense<0.000000e+00> : vector<8x384xf32>
    %21 = tpu.matmul %0, %20, %cst {dimension_numbers = #tpu.dot_dimension_numbers<[1], [0], [0], [1], [0, 0, 1, 1], [], []>} : vector<8x72xf32>, vector<72x384xf32>, vector<8x384xf32> -> vector<8x384xf32>
    %22 = vector.broadcast %1 : vector<8x1xf32> to vector<8x384xf32>
    %23 = arith.addf %21, %22 : vector<8x384xf32>
    %c0_22 = arith.constant 0 : index
    %c0_23 = arith.constant 0 : index
    %c0_24 = arith.constant 0 : index
    %24 = vector.load %arg4[%c0_22, %c0_23, %c0_24] : memref<1x8x384xf32, #tpu.memory_space<vmem>>, vector<1x8x384xf32>
    %25 = vector.shape_cast %24 : vector<1x8x384xf32> to vector<8x384xf32>
    %26 = vector.shape_cast %23 : vector<8x384xf32> to vector<1x8x384xf32>
    tpu.vector_store %arg4[%c0_22, %c0_23, %c0_24], %26 {strides = array<i32>} : memref<1x8x384xf32, #tpu.memory_space<vmem>>, vector<1x8x384xf32>,
    return
  }
  func.func @transform_0(%arg0: i32) -> (i32, i32, i32) {
    %c0_i32 = arith.constant 0 : i32
    %c0_i32_0 = arith.constant 0 : i32
    %c0_i32_1 = arith.constant 0 : i32
    return %arg0, %c0_i32, %c0_i32_0 : i32, i32, i32
  }
  func.func @transform_1(%arg0: i32) -> (i32, i32) {
    %c0_i32 = arith.constant 0 : i32
    %c0_i32_0 = arith.constant 0 : i32
    %c0_i32_1 = arith.constant 0 : i32
    return %c0_i32, %c0_i32_0 : i32, i32
  }
  func.func @transform_2(%arg0: i32) -> (i32, i32) {
    %c0_i32 = arith.constant 0 : i32
    %c0_i32_0 = arith.constant 0 : i32
    %c0_i32_1 = arith.constant 0 : i32
    return %c0_i32, %c0_i32_0 : i32, i32
  }
  func.func @transform_3(%arg0: i32) -> (i32, i32, i32) {
    %c0_i32 = arith.constant 0 : i32
    %c0_i32_0 = arith.constant 0 : i32
    %c0_i32_1 = arith.constant 0 : i32
    return %arg0, %c0_i32, %c0_i32_0 : i32, i32, i32
  }
}

</mosaic_0001>

<llo_original>
// kernel: tpu_custom_call.1
$region0: #{tpu_custom_call.1}
  #allocation0 [shape = 'u32[]', space=smem, size = 0x4, offset = 0x4, fixed_abs, tag = 'smem constant byte address 0x4 - core index']
  #allocation1 [shape = 'u32[144,128]{1,0:T(1,128)}', space=vmem, size = 0x12000, scoped, tag = 'internal scratch']
  %s0 = inlined_call_operand.hbm [shape: f32[2,8,512], index: 0, kind: input, shape index: {}]
  %s1 = inlined_call_operand.vmem [shape: f32[8,72], index: 1, kind: input, shape index: {}]
  %s2 = inlined_call_operand.vmem [shape: f32[8,1], index: 2, kind: input, shape index: {}]
  %s3 = inlined_call_operand.hbm [shape: f32[2,8,384], index: 3, kind: output, shape index: {}]
  %s4 = sld [smem:[#allocation0]]
  $region49: #{tpu_custom_call.1} parent=0
    _
  %s6 = ssub.s32 1, %s4
  %s7 = scalar_select 0, %s6, %s4
  $region1: #{tpu_custom_call.1} parent=0
    #allocation2 [shape = 'u8[32768]{0}', space=vmem, size = 0x8000, scoped, tag = 'input window, operand 0']
    #allocation3 [shape = 's32[2]{0}', space=sflag, size = 0x8, scoped, tag = 'scoped memory for tpu_custom_call.1']
    #allocation4 [shape = 's32[2]{0}', space=sflag, size = 0x8, scoped, tag = 'scoped memory for tpu_custom_call.1']
    #allocation5 [shape = 'u8[24576]{0}', space=vmem, size = 0x6000, scoped, tag = 'output window, operand 0']
    %8 = vsyncpa [#allocation3], 0
    %s9 = scalar_lea.sflag [#allocation3], 1
    %10 = vsyncpa %s9, 0
    %11 = vsyncpa [#allocation4], 0
    %s12 = scalar_lea.sflag [#allocation4], 1
    %13 = vsyncpa %s12, 0
    loop: start=0, step=1, limit=4
    $region2: #{tpu_custom_call.1} parent=1 // loop_pre_header
      _
    $region3: #{tpu_custom_call.1} parent=1 // loop_header
      %s15 = sphi 0, %s19
      %p16 = scmp.ge.s32.totalorder %s15, 4
      %s25 = sphi 0, %s27
      %s28 = sphi 0, %s25
      %s29 = sphi 0, %s28
      %s45 = sphi 0, %s29
      %s49 = sphi 0, %s49
      %s51 = sphi 0, %s49
      %s52 = sphi 0, %s51
      %s66 = sphi 0, %s52
      %s70 = sphi 0, %s70
      %s72 = sphi 0, %s70
      %s73 = sphi 0, %s72
      %s87 = sphi 0, %s73
      %s93 = sphi 0, %s95
      %s96 = sphi 0, %s93
      %s97 = sphi 0, %s96
      %s113 = sphi 0, %s97
    $region4: #{tpu_custom_call.1} parent=1 // loop_header_branch
      %18 = sbr.rel (%p16) target = $region8
    $region5: #{tpu_custom_call.1} parent=1 // loop_body
      %s20 = ssub.s32 %s15, 1
      %s21 = ssub.s32 %s15, 2
      %s22 = sadd.s32 %s15, 1
      %s23 = ssub.s32 %s15, %s22
      %p24 = scmp.eq.s32.totalorder %s23, 0
      %s26 = sadd.s32 %s25, 1
      %s27 = scalar_select %p24, %s25, %s26
      %p30 = pneg %p24
      %p31 = scmp.eq.s32.totalorder %s15, 1
      %p32 = por %p30, %p31
      %p33 = scmp.ne.s32.totalorder %s25, %s28
      %p34 = scmp.eq.s32.totalorder %s15, 0
      %p35 = por %p33, %p34
      %p36 = scmp.ne.s32.totalorder %s25, %s28
      %p37 = scmp.eq.s32.totalorder %s20, 1
      %p38 = por %p36, %p37
      %p39 = scmp.ne.s32.totalorder %s28, %s29
      %p40 = scmp.eq.s32.totalorder %s20, 0
      %p41 = por %p39, %p40
      %p42 = scmp.ne.s32.totalorder %s28, %s29
      %p43 = scmp.eq.s32.totalorder %s21, 1
      %p44 = por %p42, %p43
      %p46 = scmp.ne.s32.totalorder %s29, %s45
      %p47 = scmp.eq.s32.totalorder %s21, 0
      %p48 = por %p46, %p47
      %s50 = sadd.s32 %s49, 1
      %p53 = scmp.eq.s32.totalorder %s15, 1
      %p54 = scmp.ne.s32.totalorder %s49, %s51
      %p55 = scmp.eq.s32.totalorder %s15, 0
      %p56 = por %p54, %p55
      %p57 = scmp.ne.s32.totalorder %s49, %s51
      %p58 = scmp.eq.s32.totalorder %s20, 1
      %p59 = por %p57, %p58
      %p60 = scmp.ne.s32.totalorder %s51, %s52
      %p61 = scmp.eq.s32.totalorder %s20, 0
      %p62 = por %p60, %p61
      %p63 = scmp.ne.s32.totalorder %s51, %s52
      %p64 = scmp.eq.s32.totalorder %s21, 1
      %p65 = por %p63, %p64
      %p67 = scmp.ne.s32.totalorder %s52, %s66
      %p68 = scmp.eq.s32.totalorder %s21, 0
      %p69 = por %p67, %p68
      %s71 = sadd.s32 %s70, 1
      %p74 = scmp.eq.s32.totalorder %s15, 1
      %p75 = scmp.ne.s32.totalorder %s70, %s72
      %p76 = scmp.eq.s32.totalorder %s15, 0
      %p77 = por %p75, %p76
      %p78 = scmp.ne.s32.totalorder %s70, %s72
      %p79 = scmp.eq.s32.totalorder %s20, 1
      %p80 = por %p78, %p79
      %p81 = scmp.ne.s32.totalorder %s72, %s73
      %p82 = scmp.eq.s32.totalorder %s20, 0
      %p83 = por %p81, %p82
      %p84 = scmp.ne.s32.totalorder %s72, %s73
      %p85 = scmp.eq.s32.totalorder %s21, 1
      %p86 = por %p84, %p85
      %p88 = scmp.ne.s32.totalorder %s73, %s87
      %p89 = scmp.eq.s32.totalorder %s21, 0
      %p90 = por %p88, %p89
      %s91 = ssub.s32 %s15, %s22
      %p92 = scmp.eq.s32.totalorder %s91, 0
      %s94 = sadd.s32 %s93, 1
      %s95 = scalar_select %p92, %s93, %s94
      %p98 = pneg %p92
      %p99 = scmp.eq.s32.totalorder %s15, 1
      %p100 = por %p98, %p99
      %p101 = scmp.ne.s32.totalorder %s93, %s96
      %p102 = scmp.eq.s32.totalorder %s15, 0
      %p103 = por %p101, %p102
      %p104 = scmp.ne.s32.totalorder %s93, %s96
      %p105 = scmp.eq.s32.totalorder %s20, 1
      %p106 = por %p104, %p105
      %p107 = scmp.ne.s32.totalorder %s96, %s97
      %p108 = scmp.eq.s32.totalorder %s20, 0
      %p109 = por %p107, %p108
      %p110 = scmp.ne.s32.totalorder %s96, %s97
      %p111 = scmp.eq.s32.totalorder %s21, 1
      %p112 = por %p110, %p111
      %p114 = scmp.ne.s32.totalorder %s97, %s113
      %p115 = scmp.eq.s32.totalorder %s21, 0
      %p116 = por %p114, %p115
      %p117 = scmp.le.s32.totalorder 1, %s15
      %p118 = scmp.lt.s32.totalorder %s15, 3
      %p119 = pnand %p117, %p118
      %p120 = pneg %p119
      // Predicated region
      $region9: #{tpu_custom_call.1} parent=5 // pred_check
        _
      $region10: #{tpu_custom_call.1} parent=5 // pred_check_branch
        %122 = sbr.rel (%p119) target = $region12
      $region11: #{tpu_custom_call.1} parent=5 // pred_region
        %s123 = ssub.s32 %s15, 1
        // Predicated region
        $region13: #{tpu_custom_call.1} parent=11 // pred_check
          %p124 = pneg %p62
        $region14: #{tpu_custom_call.1} parent=11 // pred_check_branch
          %126 = sbr.rel (%p124) target = $region16
        $region15: #{tpu_custom_call.1} parent=11 // pred_region
          _
        $region16: #{tpu_custom_call.1} parent=11 // pred_fallthru
          _
        // Predicated region
        $region17: #{tpu_custom_call.1} parent=11 // pred_check
          %p127 = pneg %p83
        $region18: #{tpu_custom_call.1} parent=11 // pred_check_branch
          %129 = sbr.rel (%p127) target = $region20
        $region19: #{tpu_custom_call.1} parent=11 // pred_region
          _
        $region20: #{tpu_custom_call.1} parent=11 // pred_fallthru
          _
      $region12: #{tpu_custom_call.1} parent=5 // pred_fallthru
        _
      %p130 = scmp.lt.s32.totalorder %s15, 2
      // Predicated region
      $region21: #{tpu_custom_call.1} parent=5 // pred_check
        %p131 = pneg %p130
      $region22: #{tpu_custom_call.1} parent=5 // pred_check_branch
        %133 = sbr.rel (%p131) target = $region24
      $region23: #{tpu_custom_call.1} parent=5 // pred_region
        // Predicated region
        $region25: #{tpu_custom_call.1} parent=23 // pred_check
          %p134 = pneg %p35
        $region26: #{tpu_custom_call.1} parent=23 // pred_check_branch
          %136 = sbr.rel (%p134) target = $region28
        $region27: #{tpu_custom_call.1} parent=23 // pred_region
          %s137 = sand.u32 %s25, 1
          %s138 = scalar_lea.sflag [#allocation3], %s137
          %s139 = sand.u32 %s25, 1
          %s140 = smul.addr %s139, 32
          %s141 = scalar_lea.vmem [#allocation2], %s140
          %s143 = ssub.s32 512, 512
          %144 = vsyncadd %s138, %s143
          %s145 = smul.addr %s15, 4
          %s146 = smul.addr %s145, 128
          %s147 = scalar_lea.hbm %s0, %s146
          %s149 = sshll.u32 %s141, 4
          %s150 = int_to_ptr.vmem [resolvable:$true] %s149
          %152 = dma.hbm_to_vmem [thread:$0]  %s147, 512, %s150, %s138
        $region28: #{tpu_custom_call.1} parent=23 // pred_fallthru
          _
      $region24: #{tpu_custom_call.1} parent=5 // pred_fallthru
        _
      %p153 = scmp.le.s32.totalorder 1, %s15
      %p154 = scmp.lt.s32.totalorder %s15, 3
      %p155 = pnand %p153, %p154
      %p156 = pneg %p155
      // Predicated region
      $region29: #{tpu_custom_call.1} parent=5 // pred_check
        _
      $region30: #{tpu_custom_call.1} parent=5 // pred_check_branch
        %158 = sbr.rel (%p155) target = $region32
      $region31: #{tpu_custom_call.1} parent=5 // pred_region
        %s159 = ssub.s32 %s15, 1
        %s160 = sand.u32 %s28, 1
        %s161 = scalar_lea.sflag [#allocation3], %s160
        %s162 = sand.u32 %s28, 1
        %s163 = smul.addr %s162, 32
        %s164 = scalar_lea.vmem [#allocation2], %s163
        // Predicated region
        $region33: #{tpu_custom_call.1} parent=31 // pred_check
          %p165 = pneg %p41
        $region34: #{tpu_custom_call.1} parent=31 // pred_check_branch
          %167 = sbr.rel (%p165) target = $region36
        $region35: #{tpu_custom_call.1} parent=31 // pred_region
          %168 = dma.done %s161, 512
        $region36: #{tpu_custom_call.1} parent=31 // pred_fallthru
          _
        %s169 = sand.u32 %s28, 1
        %s170 = scalar_lea.sflag [#allocation3], %s169
        %s171 = sand.u32 %s28, 1
        %s172 = smul.addr %s171, 32
        %s173 = scalar_lea.vmem [#allocation2], %s172
        %p174 = pneg %p41
        %p175 = pneg %p38
        %p176 = pneg %p62
        %p177 = pneg %p59
        %p178 = pneg %p83
        %p179 = pneg %p80
        %p180 = pneg %p109
        %p181 = pneg %p106
        %s182 = sand.u32 %s96, 1
        %s183 = scalar_lea.sflag [#allocation4], %s182
        %s184 = sand.u32 %s96, 1
        %s185 = smul.addr %s184, 24
        %s186 = scalar_lea.vmem [#allocation5], %s185
        %v187 = vld [vmem:[%s1] sm:$0xff]
        %v188 = vld [vmem:[%s2] sm:$0xff]
        %v189 = vld [vmem:[%s164] sm:$0xff]
        %v190 = vld [vmem:[%s164 + $0x8] sm:$0xff]
        %v191 = vld [vmem:[%s164 + $0x10] sm:$0xff]
        %v192 = vld [vmem:[%s164] sm:$0xff]
        %v193 = vld [vmem:[%s164 + $0x8] sm:$0xff]
        %v194 = vld [vmem:[%s164 + $0x10] sm:$0xff]
        %v195 = vld [vmem:[%s164 + $0x18] sm:$0xff]
        %200 = vrot.lane.b32.xlu0 %v192, 127
        %v201 = vpop.permute.xlu0 %200
        %202 = vrot.lane.b32.xlu0 %v193, 127
        %v203 = vpop.permute.xlu0 %202
        %204 = vrot.lane.b32.xlu0 %v194, 127
        %v205 = vpop.permute.xlu0 %204
        %206 = vrot.lane.b32.xlu0 %v195, 127
        %v207 = vpop.permute.xlu0 %206
        %vm208 = vcmask 1039360
        %v209 = vsel %vm208, %v201, %v203
        %v210 = vsel %vm208, %v203, %v205
        %v211 = vsel %vm208, %v205, %v207
        %215 = vrot.lane.b32.xlu0 %v192, 126
        %v216 = vpop.permute.xlu0 %215
        %217 = vrot.lane.b32.xlu0 %v193, 126
        %v218 = vpop.permute.xlu0 %217
        %219 = vrot.lane.b32.xlu0 %v194, 126
        %v220 = vpop.permute.xlu0 %219
        %221 = vrot.lane.b32.xlu0 %v195, 126
        %v222 = vpop.permute.xlu0 %221
        %vm223 = vcmask 1031168
        %v224 = vsel %vm223, %v216, %v218
        %v225 = vsel %vm223, %v218, %v220
        %v226 = vsel %vm223, %v220, %v222
        %230 = vrot.lane.b32.xlu0 %v192, 110
        %v231 = vpop.permute.xlu0 %230
        %232 = vrot.lane.b32.xlu0 %v193, 110
        %v233 = vpop.permute.xlu0 %232
        %234 = vrot.lane.b32.xlu0 %v194, 110
        %v235 = vpop.permute.xlu0 %234
        %236 = vrot.lane.b32.xlu0 %v195, 110
        %v237 = vpop.permute.xlu0 %236
        %vm238 = vcmask 900096
        %v239 = vsel %vm238, %v231, %v233
        %v240 = vsel %vm238, %v233, %v235
        %v241 = vsel %vm238, %v235, %v237
        %245 = vrot.lane.b32.xlu0 %v192, 109
        %v246 = vpop.permute.xlu0 %245
        %247 = vrot.lane.b32.xlu0 %v193, 109
        %v248 = vpop.permute.xlu0 %247
        %249 = vrot.lane.b32.xlu0 %v194, 109
        %v250 = vpop.permute.xlu0 %249
        %251 = vrot.lane.b32.xlu0 %v195, 109
        %v252 = vpop.permute.xlu0 %251
        %vm253 = vcmask 891904
        %v254 = vsel %vm253, %v246, %v248
        %v255 = vsel %vm253, %v248, %v250
        %v256 = vsel %vm253, %v250, %v252
        %260 = vrot.lane.b32.xlu0 %v192, 108
        %v261 = vpop.permute.xlu0 %260
        %262 = vrot.lane.b32.xlu0 %v193, 108
        %v263 = vpop.permute.xlu0 %262
        %264 = vrot.lane.b32.xlu0 %v194, 108
        %v265 = vpop.permute.xlu0 %264
        %266 = vrot.lane.b32.xlu0 %v195, 108
        %v267 = vpop.permute.xlu0 %266
        %vm268 = vcmask 883712
        %v269 = vsel %vm268, %v261, %v263
        %v270 = vsel %vm268, %v263, %v265
        %v271 = vsel %vm268, %v265, %v267
        %275 = vrot.lane.b32.xlu0 %v192, 92
        %v276 = vpop.permute.xlu0 %275
        %277 = vrot.lane.b32.xlu0 %v193, 92
        %v278 = vpop.permute.xlu0 %277
        %279 = vrot.lane.b32.xlu0 %v194, 92
        %v280 = vpop.permute.xlu0 %279
        %281 = vrot.lane.b32.xlu0 %v195, 92
        %v282 = vpop.permute.xlu0 %281
        %vm283 = vcmask 752640
        %v284 = vsel %vm283, %v276, %v278
        %v285 = vsel %vm283, %v278, %v280
        %v286 = vsel %vm283, %v280, %v282
        %290 = vrot.lane.b32.xlu0 %v192, 91
        %v291 = vpop.permute.xlu0 %290
        %292 = vrot.lane.b32.xlu0 %v193, 91
        %v293 = vpop.permute.xlu0 %292
        %294 = vrot.lane.b32.xlu0 %v194, 91
        %v295 = vpop.permute.xlu0 %294
        %296 = vrot.lane.b32.xlu0 %v195, 91
        %v297 = vpop.permute.xlu0 %296
        %vm298 = vcmask 744448
        %v299 = vsel %vm298, %v291, %v293
        %v300 = vsel %vm298, %v293, %v295
        %v301 = vsel %vm298, %v295, %v297
        %305 = vrot.lane.b32.xlu0 %v192, 90
        %v306 = vpop.permute.xlu0 %305
        %307 = vrot.lane.b32.xlu0 %v193, 90
        %v308 = vpop.permute.xlu0 %307
        %309 = vrot.lane.b32.xlu0 %v194, 90
        %v310 = vpop.permute.xlu0 %309
        %311 = vrot.lane.b32.xlu0 %v195, 90
        %v312 = vpop.permute.xlu0 %311
        %vm313 = vcmask 736256
        %v314 = vsel %vm313, %v306, %v308
        %v315 = vsel %vm313, %v308, %v310
        %v316 = vsel %vm313, %v310, %v312
        %321 = vset.pattern.permute.xlu0 0
        %322 = vperm.xlu0 %321, %v188
        %v323 = vpop.permute.xlu0 %322
        %vm325 = vcmask 588800
        %v327 = vsel %vm325, %v187, 0
        %329 = vmatprep.subr.mxu0 %v190
        %330 = vmatpush1.msra.mxu0 %v189
        %331 = vmatprep.subr.mxu0 %v210
        %332 = vmatpush1.msra.mxu0 %v209
        %333 = vmatprep.subr.mxu0 %v225
        %334 = vmatpush1.msra.mxu0 %v224
        %335 = vmatprep.subr.mxu0 %v240
        %336 = vmatpush1.msra.mxu0 %v239
        %337 = vmatprep.subr.mxu0 %v255
        %338 = vmatpush1.msra.mxu0 %v254
        %339 = vmatprep.subr.mxu0 %v270
        %340 = vmatpush1.msra.mxu0 %v269
        %341 = vmatprep.subr.mxu0 %v285
        %342 = vmatpush1.msra.mxu0 %v284
        %343 = vmatprep.subr.mxu0 %v300
        %344 = vmatpush1.msra.mxu0 %v299
        %345 = vmatprep.subr.mxu0 %v315
        %346 = vmatpush1.msra.mxu0 %v314
        %347 = vmatprep.subr.mxu0 0.0
        %348 = vmatpush1.msra.mxu0 0.0
        %349 = vmatprep.subr.mxu0 0.0
        %350 = vmatpush1.msra.mxu0 0.0
        %351 = vmatprep.subr.mxu0 0.0
        %352 = vmatpush1.msra.mxu0 0.0
        %353 = vmatprep.subr.mxu0 0.0
        %354 = vmatpush1.msra.mxu0 0.0
        %355 = vmatprep.subr.mxu0 0.0
        %356 = vmatpush1.msra.mxu0 0.0
        %357 = vmatprep.subr.mxu0 0.0
        %358 = vmatpush1.msra.mxu0 0.0
        %359 = vmatprep.subr.mxu0 0.0
        %360 = vmatpush1.msra.mxu0 0.0
        %361 = vmatprep.subr.mxu0 0.0
        %362 = vmatpush1.msra.mxu0 0.0
        %363 = vmatprep.subr.mxu0 0.0
        %364 = vmatpush1.msra.mxu0 0.0
        %365 = vmatprep.subr.mxu0 0.0
        %366 = vmatpush1.msra.mxu0 0.0
        %367 = vmatprep.subr.mxu0 0.0
        %368 = vmatpush1.msra.mxu0 0.0
        %369 = vmatprep.subr.mxu0 0.0
        %370 = vmatpush1.msra.mxu0 0.0
        %371 = vmatprep.subr.mxu0 0.0
        %372 = vmatpush1.msra.mxu0 0.0
        %373 = vmatprep.subr.mxu0 0.0
        %374 = vmatpush1.msra.mxu0 0.0
        %375 = vmatprep.subr.mxu0 0.0
        %376 = vmatpush1.msra.mxu0 0.0
        %377 = vmatprep.subr.mxu0 0.0
        %378 = vmatpush1.msra.mxu0 0.0
        %379 = vmatprep.subr.mxu0 0.0
        %380 = vmatpush1.msra.mxu0 0.0
        %381 = vmatprep.subr.mxu0 0.0
        %382 = vmatpush1.msra.mxu0 0.0
        %383 = vmatprep.subr.mxu0 0.0
        %384 = vmatpush1.msra.mxu0 0.0
        %385 = vmatprep.subr.mxu0 0.0
        %386 = vmatpush1.msra.mxu0 0.0
        %387 = vmatprep.subr.mxu0 0.0
        %388 = vmatpush1.msra.mxu0 0.0
        %389 = vmatprep.subr.mxu0 0.0
        %390 = vmatpush1.msra.mxu0 0.0
        %391 = vmatprep.subr.mxu0 0.0
        %392 = vmatpush1.msra.mxu0 0.0
        %393 = vmatprep.mubr.f32.mxu0 0.0
        %394 = vmatmul.mubr.f32.gmra.mrb[0].mxu0 %v327
        %v395 = vpop.f32.mrb[0].mxu0
        %v396 = vadd.f32 %v323, %v395
        %v397 = vpop.f32.mrb[0].mxu0
        %v398 = vadd.f32 %v323, %v397
        %399 = vdwg.mxu0
        %400 = vmatprep.subr.mxu0 0.0
        %401 = vmatpush1.msra.mxu0 %v191
        %402 = vmatprep.subr.mxu0 0.0
        %403 = vmatpush1.msra.mxu0 %v211
        %404 = vmatprep.subr.mxu0 0.0
        %405 = vmatpush1.msra.mxu0 %v226
        %406 = vmatprep.subr.mxu0 0.0
        %407 = vmatpush1.msra.mxu0 %v241
        %408 = vmatprep.subr.mxu0 0.0
        %409 = vmatpush1.msra.mxu0 %v256
        %410 = vmatprep.subr.mxu0 0.0
        %411 = vmatpush1.msra.mxu0 %v271
        %412 = vmatprep.subr.mxu0 0.0
        %413 = vmatpush1.msra.mxu0 %v286
        %414 = vmatprep.subr.mxu0 0.0
        %415 = vmatpush1.msra.mxu0 %v301
        %416 = vmatprep.subr.mxu0 0.0
        %417 = vmatpush1.msra.mxu0 %v316
        %418 = vmatprep.subr.mxu0 0.0
        %419 = vmatpush1.msra.mxu0 0.0
        %420 = vmatprep.subr.mxu0 0.0
        %421 = vmatpush1.msra.mxu0 0.0
        %422 = vmatprep.subr.mxu0 0.0
        %423 = vmatpush1.msra.mxu0 0.0
        %424 = vmatprep.subr.mxu0 0.0
        %425 = vmatpush1.msra.mxu0 0.0
        %426 = vmatprep.subr.mxu0 0.0
        %427 = vmatpush1.msra.mxu0 0.0
        %428 = vmatprep.subr.mxu0 0.0
        %429 = vmatpush1.msra.mxu0 0.0
        %430 = vmatprep.subr.mxu0 0.0
        %431 = vmatpush1.msra.mxu0 0.0
        %432 = vmatprep.subr.mxu0 0.0
        %433 = vmatpush1.msra.mxu0 0.0
        %434 = vmatprep.subr.mxu0 0.0
        %435 = vmatpush1.msra.mxu0 0.0
        %436 = vmatprep.subr.mxu0 0.0
        %437 = vmatpush1.msra.mxu0 0.0
        %438 = vmatprep.subr.mxu0 0.0
        %439 = vmatpush1.msra.mxu0 0.0
        %440 = vmatprep.subr.mxu0 0.0
        %441 = vmatpush1.msra.mxu0 0.0
        %442 = vmatprep.subr.mxu0 0.0
        %443 = vmatpush1.msra.mxu0 0.0
        %444 = vmatprep.subr.mxu0 0.0
        %445 = vmatpush1.msra.mxu0 0.0
        %446 = vmatprep.subr.mxu0 0.0
        %447 = vmatpush1.msra.mxu0 0.0
        %448 = vmatprep.subr.mxu0 0.0
        %449 = vmatpush1.msra.mxu0 0.0
        %450 = vmatprep.subr.mxu0 0.0
        %451 = vmatpush1.msra.mxu0 0.0
        %452 = vmatprep.subr.mxu0 0.0
        %453 = vmatpush1.msra.mxu0 0.0
        %454 = vmatprep.subr.mxu0 0.0
        %455 = vmatpush1.msra.mxu0 0.0
        %456 = vmatprep.subr.mxu0 0.0
        %457 = vmatpush1.msra.mxu0 0.0
        %458 = vmatprep.subr.mxu0 0.0
        %459 = vmatpush1.msra.mxu0 0.0
        %460 = vmatprep.subr.mxu0 0.0
        %461 = vmatpush1.msra.mxu0 0.0
        %462 = vmatprep.subr.mxu0 0.0
        %463 = vmatpush1.msra.mxu0 0.0
        %464 = vmatprep.mubr.f32.mxu0 0.0
        %465 = vmatmul.mubr.f32.gmra.mrb[0].mxu0 %v327
        %v466 = vpop.f32.mrb[0].mxu0
        %v467 = vadd.f32 %v323, %v466
        %v468 = vpop.f32.mrb[0].mxu0
        %469 = vdwg.mxu0
        %470 = vst [vmem:[%s186] sm:$0xff] %v396
        %471 = vst [vmem:[%s186 + $0x8] sm:$0xff] %v398
        %472 = vst [vmem:[%s186 + $0x10] sm:$0xff] %v467
        %s473 = sand.u32 %s96, 1
        %s474 = scalar_lea.sflag [#allocation4], %s473
        %s475 = sand.u32 %s96, 1
        %s476 = smul.addr %s475, 24
        %s477 = scalar_lea.vmem [#allocation5], %s476
        // Predicated region
        $region37: #{tpu_custom_call.1} parent=31 // pred_check
          %p478 = pneg %p106
        $region38: #{tpu_custom_call.1} parent=31 // pred_check_branch
          %480 = sbr.rel (%p478) target = $region40
        $region39: #{tpu_custom_call.1} parent=31 // pred_region
          %s482 = ssub.s32 384, 384
          %483 = vsyncadd %s474, %s482
          %s484 = smul.addr %s20, 3
          %s485 = smul.addr %s484, 128
          %s486 = scalar_lea.hbm %s3, %s485
          %s488 = sshll.u32 %s477, 4
          %s489 = int_to_ptr.vmem [resolvable:$true] %s488
          %491 = dma.vmem_to_hbm [thread:$0]  %s489, 384, %s486, %s474
        $region40: #{tpu_custom_call.1} parent=31 // pred_fallthru
          _
      $region32: #{tpu_custom_call.1} parent=5 // pred_fallthru
        _
      %p492 = scmp.le.s32.totalorder 2, %s15
      // Predicated region
      $region41: #{tpu_custom_call.1} parent=5 // pred_check
        %p493 = pneg %p492
      $region42: #{tpu_custom_call.1} parent=5 // pred_check_branch
        %495 = sbr.rel (%p493) target = $region44
      $region43: #{tpu_custom_call.1} parent=5 // pred_region
        %s496 = ssub.s32 %s15, 2
        // Predicated region
        $region45: #{tpu_custom_call.1} parent=43 // pred_check
          %p497 = pneg %p112
        $region46: #{tpu_custom_call.1} parent=43 // pred_check_branch
          %499 = sbr.rel (%p497) target = $region48
        $region47: #{tpu_custom_call.1} parent=43 // pred_region
          %s500 = sand.u32 %s97, 1
          %s501 = scalar_lea.sflag [#allocation4], %s500
          %s502 = sand.u32 %s97, 1
          %s503 = smul.addr %s502, 24
          %s504 = scalar_lea.vmem [#allocation5], %s503
          %505 = dma.done %s501, 384
        $region48: #{tpu_custom_call.1} parent=43 // pred_fallthru
          _
      $region44: #{tpu_custom_call.1} parent=5 // pred_fallthru
        _
    $region6: #{tpu_custom_call.1} parent=1 // loop_footer
      %s19 = sadd.s32 1, %s15
    $region7: #{tpu_custom_call.1} parent=1 // loop_footer_branch
      %14 = sbr.rel target = $region3
    $region8: #{tpu_custom_call.1} parent=1 // loop_exit
      _
    %506 = vsyncpa [#allocation3], 1
    %s507 = scalar_lea.sflag [#allocation3], 1
    %508 = vsyncpa %s507, 1
    %509 = vsyncpa [#allocation4], 1
    %s510 = scalar_lea.sflag [#allocation4], 1
    %511 = vsyncpa %s510, 1

</llo_original>
